<compile_context>
chip_gen: v5e
topology: v5e:2x2
jax: 0.10.0
libtpu: 0.0.40
codegen_flags: <defaults>
</compile_context>

<pallas_src>
import jax
import jax.numpy as jnp
from jax.experimental import pallas as pl
from jax.experimental.pallas import tpu as pltpu


# ------------------------------- Pallas kernel ------------------------------ #

def _downsample_a_kernel(x_ref, sel_ref, o_ref):
    """One batch-tile step.

    x_ref  : (Bt, G, P*H*W)   Bt images, G = C//P channel groups, P channels/row
    sel_ref: (P*H*W, P*Sh)    block-diagonal 0/1 gather matrix (VMEM resident)
    o_ref  : (Bt, 2*G, P*Sh)  data groups [0, G), zero groups [G, 2G)
    """
    bt, g, phw = x_ref.shape
    psh = sel_ref.shape[1]
    # Fold batch into the matmul M dimension (leading-dim collapse only).
    xm = x_ref[...].reshape(bt * g, phw)
    y = jnp.dot(xm, sel_ref[...], preferred_element_type=jnp.float32)
    o_ref[:, :g, :] = y.reshape(bt, g, psh).astype(o_ref.dtype)
    o_ref[:, g:, :] = jnp.zeros((bt, g, psh), o_ref.dtype)


# ------------------------------ JAX-side wrapper ----------------------------- #

def _lane_pack_factor(C, Sh):
    """Smallest power-of-two P dividing C with P*Sh >= 128 (best effort)."""
    p = 1
    while p * Sh < 128 and C % (2 * p) == 0:
        p *= 2
    return p


def _make_selection_matrix(H, W, P, dtype):
    """Block-diagonal (P*H*W, P*Hh*Wh) 0/1 matrix selecting x[..., ::2, ::2]."""
    Hh, Wh = (H + 1) // 2, (W + 1) // 2
    HW, Sh = H * W, Hh * Wh
    src = (2 * jnp.arange(Hh)[:, None] * W + 2 * jnp.arange(Wh)[None, :]).reshape(-1)
    base = (jnp.arange(HW)[:, None] == src[None, :]).astype(dtype)       # (HW, Sh)
    if P == 1:
        return base, Hh, Wh
    sel = jnp.einsum('pq,ks->pkqs', jnp.eye(P, dtype=dtype), base)
    return sel.reshape(P * HW, P * Sh), Hh, Wh


def downsample_a(x, stride=2):
    """DownsampleA forward: NCHW in, NCHW out with 2x channels, /2 spatial."""
    assert stride == 2                     # mirrors the PyTorch module's assert
    assert jnp.issubdtype(x.dtype, jnp.floating), "MXU selection path assumes float input"
    B, C, H, W = x.shape
    Hh, Wh = (H + 1) // 2, (W + 1) // 2
    HW, Sh = H * W, Hh * Wh

    P = _lane_pack_factor(C, Sh)           # channels packed per row (lane-dense out)
    G = C // P                             # channel groups per image
    sel, _, _ = _make_selection_matrix(H, W, P, x.dtype)
    x3 = x.reshape(B, G, P * HW)           # contiguous reshape, no data movement

    # Batch tile: target ~512 matmul rows per step, keep >=2 grid blocks when
    # B >= 2 (v7x has 2 TensorCores), and make Bt divide B (no padded blocks).
    target_rows = 512
    bt = max(1, min(target_rows // max(G, 1), B if B == 1 else B // 2))
    while B % bt:
        bt -= 1

    itemsize = jnp.dtype(x.dtype).itemsize
    x_blk = bt * C * HW * itemsize
    o_blk = bt * 2 * C * Sh * itemsize
    s_blk = (P * HW) * (P * Sh) * itemsize
    # Double-buffered x/out tiles + (conservatively double-buffered) selection
    # matrix + slack; clamp to 48 MiB so it also fits v7x's 64 MiB VMEM.
    vmem_limit = int(min(2 * (x_blk + o_blk) + 2 * s_blk + (4 << 20), 48 << 20))

    out = pl.pallas_call(
        _downsample_a_kernel,
        out_shape=jax.ShapeDtypeStruct((B, 2 * G, P * Sh), x.dtype),
        grid=(B // bt,),
        in_specs=[
            # x tile: blocked on batch only; last two dims are full array dims.
            pl.BlockSpec((bt, G, P * HW), lambda i: (i, 0, 0)),
            # selection matrix: constant block index -> fetched once, stays in VMEM.
            pl.BlockSpec((P * HW, P * Sh), lambda i: (0, 0)),
        ],
        out_specs=pl.BlockSpec((bt, 2 * G, P * Sh), lambda i: (i, 0, 0)),
        compiler_params=pltpu.CompilerParams(
            dimension_semantics=("parallel",),
            vmem_limit_bytes=vmem_limit,
        ),
        cost_estimate=pl.CostEstimate(
            flops=2 * B * G * (P * HW) * (P * Sh),
            transcendentals=0,
            bytes_accessed=(B * C * HW + (P * HW) * (P * Sh) + B * 2 * C * Sh) * itemsize,
        ),
    )(x3, sel)

    # (B, 2G, P*Sh) -> (B, 2C, Hh, Wh): contiguous reshape, no data movement.
    return out.reshape(B, 2 * C, Hh, Wh)


# ----------------------------- pure-JAX reference ---------------------------- #

def downsample_a_reference(x):
    y = x[:, :, ::2, ::2]                  # AvgPool2d(kernel_size=1, stride=2)
    return jnp.concatenate([y, jnp.zeros_like(y)], axis=1)


# ----------------------------------- main ------------------------------------ #

if __name__ == "__main__":
    key = jax.random.PRNGKey(0)
    B, C, H, W = 2, 4, 16, 16
    x = jax.random.normal(key, (B, C, H, W), jnp.float32)

    out = jax.block_until_ready(jax.jit(downsample_a)(x))
    ref = jax.block_until_ready(downsample_a_reference(x))

    assert out.shape == (B, 2 * C, H // 2, W // 2), out.shape
    max_err = float(jnp.max(jnp.abs(out - ref)))
    assert max_err < 1e-6, f"mismatch vs reference: {max_err}"

    print("KERNEL_OK")
</pallas_src>

<mosaic_0001>
module attributes {stable_mosaic.version = 11 : i64} {
  func.func @_downsample_a_kernel(%arg0: i32, %arg1: memref<1x2x512xf32, #tpu.memory_space<vmem>>, %arg2: memref<512x128xf32, #tpu.memory_space<vmem>>, %arg3: memref<1x4x128xf32, #tpu.memory_space<vmem>>) attributes {dimension_semantics = [#tpu.dimension_semantics<parallel>], iteration_bounds = array<i64: 2>, scalar_prefetch = 0 : i64, scratch_operands = 0 : i64, tpu.core_type = #tpu.core_type<tc>, window_params = [{transform_indices = @transform_0, window_bounds = array<i64: 1, 2, 512>}, {pipeline_mode = #tpu.pipeline_mode<synchronous>, transform_indices = @transform_1, window_bounds = array<i64: 512, 128>}, {transform_indices = @transform_2, window_bounds = array<i64: 1, 4, 128>}]} {
    %c0 = arith.constant 0 : index
    %c0_0 = arith.constant 0 : index
    %c0_1 = arith.constant 0 : index
    %0 = vector.load %arg1[%c0, %c0_0, %c0_1] : memref<1x2x512xf32, #tpu.memory_space<vmem>>, vector<1x2x512xf32>
    %1 = vector.shape_cast %0 : vector<1x2x512xf32> to vector<2x512xf32>
    %c0_2 = arith.constant 0 : index
    %c0_3 = arith.constant 0 : index
    %2 = vector.load %arg2[%c0_2, %c0_3] : memref<512x128xf32, #tpu.memory_space<vmem>>, vector<512x128xf32>
    %cst = arith.constant dense<0.000000e+00> : vector<2x128xf32>
    %3 = tpu.matmul %1, %2, %cst {dimension_numbers = #tpu.dot_dimension_numbers<[1], [0], [0], [1], [0, 0, 1, 1], [], []>} : vector<2x512xf32>, vector<512x128xf32>, vector<2x128xf32> -> vector<2x128xf32>
    %4 = vector.shape_cast %3 : vector<2x128xf32> to vector<1x2x128xf32>
    %c0_4 = arith.constant 0 : index
    %c0_5 = arith.constant 0 : index
    %c0_6 = arith.constant 0 : index
    %5 = vector.load %arg3[%c0_4, %c0_5, %c0_6] : memref<1x4x128xf32, #tpu.memory_space<vmem>>, vector<1x2x128xf32>
    tpu.vector_store %arg3[%c0_4, %c0_5, %c0_6], %4 {strides = array<i32>} : memref<1x4x128xf32, #tpu.memory_space<vmem>>, vector<1x2x128xf32>,
    %cst_7 = arith.constant 0.000000e+00 : f32
    %6 = vector.broadcast %cst_7 : f32 to vector<1x2x128xf32>
    %c0_8 = arith.constant 0 : index
    %c2 = arith.constant 2 : index
    %c0_9 = arith.constant 0 : index
    %7 = vector.load %arg3[%c0_8, %c2, %c0_9] : memref<1x4x128xf32, #tpu.memory_space<vmem>>, vector<1x2x128xf32>
    tpu.vector_store %arg3[%c0_8, %c2, %c0_9], %6 {strides = array<i32>} : memref<1x4x128xf32, #tpu.memory_space<vmem>>, vector<1x2x128xf32>,
    return
  }
  func.func @transform_0(%arg0: i32) -> (i32, i32, i32) {
    %c0_i32 = arith.constant 0 : i32
    %c0_i32_0 = arith.constant 0 : i32
    %c0_i32_1 = arith.constant 0 : i32
    return %arg0, %c0_i32, %c0_i32_0 : i32, i32, i32
  }
  func.func @transform_1(%arg0: i32) -> (i32, i32) {
    %c0_i32 = arith.constant 0 : i32
    %c0_i32_0 = arith.constant 0 : i32
    %c0_i32_1 = arith.constant 0 : i32
    return %c0_i32, %c0_i32_0 : i32, i32
  }
  func.func @transform_2(%arg0: i32) -> (i32, i32, i32) {
    %c0_i32 = arith.constant 0 : i32
    %c0_i32_0 = arith.constant 0 : i32
    %c0_i32_1 = arith.constant 0 : i32
    return %arg0, %c0_i32, %c0_i32_0 : i32, i32, i32
  }
}

</mosaic_0001>

<llo_original>
// kernel: downsample_a.1
$region0: #{downsample_a.1}
  #allocation0 [shape = 'u32[]', space=smem, size = 0x4, offset = 0x4, fixed_abs, tag = 'smem constant byte address 0x4 - core index']
  #allocation1 [shape = 'u32[72,128]{1,0:T(1,128)}', space=vmem, size = 0x9000, scoped, tag = 'internal scratch']
  %s0 = inlined_call_operand.vmem [shape: f32[2,2,512], index: 0, kind: input, shape index: {}]
  %s1 = inlined_call_operand.vmem [shape: f32[512,128], index: 1, kind: input, shape index: {}]
  %s2 = inlined_call_operand.vmem [shape: f32[2,4,128], index: 2, kind: output, shape index: {}]
  %s3 = sld [smem:[#allocation0]]
  $region41: #{downsample_a.1} parent=0
    _
  %s5 = ssub.s32 1, %s3
  %s6 = scalar_select 0, %s5, %s3
  loop: start=0, step=1, limit=4
  $region2: #{downsample_a.1} parent=0 // loop_pre_header
    _
  $region3: #{downsample_a.1} parent=0 // loop_header
    %s8 = sphi 0, %s12
    %p9 = scmp.ge.s32.totalorder %s8, 4
    %s18 = sphi 0, %s20
    %s21 = sphi 0, %s18
    %s22 = sphi 0, %s21
    %s38 = sphi 0, %s22
    %s42 = sphi 0, %s42
    %s44 = sphi 0, %s42
    %s45 = sphi 0, %s44
    %s59 = sphi 0, %s45
    %s65 = sphi 0, %s67
    %s68 = sphi 0, %s65
    %s69 = sphi 0, %s68
    %s85 = sphi 0, %s69
  $region4: #{downsample_a.1} parent=0 // loop_header_branch
    %11 = sbr.rel (%p9) target = $region8
  $region5: #{downsample_a.1} parent=0 // loop_body
    %s13 = ssub.s32 %s8, 1
    %s14 = ssub.s32 %s8, 2
    %s15 = sadd.s32 %s8, 1
    %s16 = ssub.s32 %s8, %s15
    %p17 = scmp.eq.s32.totalorder %s16, 0
    %s19 = sadd.s32 %s18, 1
    %s20 = scalar_select %p17, %s18, %s19
    %p23 = pneg %p17
    %p24 = scmp.eq.s32.totalorder %s8, 1
    %p25 = por %p23, %p24
    %p26 = scmp.ne.s32.totalorder %s18, %s21
    %p27 = scmp.eq.s32.totalorder %s8, 0
    %p28 = por %p26, %p27
    %p29 = scmp.ne.s32.totalorder %s18, %s21
    %p30 = scmp.eq.s32.totalorder %s13, 1
    %p31 = por %p29, %p30
    %p32 = scmp.ne.s32.totalorder %s21, %s22
    %p33 = scmp.eq.s32.totalorder %s13, 0
    %p34 = por %p32, %p33
    %p35 = scmp.ne.s32.totalorder %s21, %s22
    %p36 = scmp.eq.s32.totalorder %s14, 1
    %p37 = por %p35, %p36
    %p39 = scmp.ne.s32.totalorder %s22, %s38
    %p40 = scmp.eq.s32.totalorder %s14, 0
    %p41 = por %p39, %p40
    %s43 = sadd.s32 %s42, 1
    %p46 = scmp.eq.s32.totalorder %s8, 1
    %p47 = scmp.ne.s32.totalorder %s42, %s44
    %p48 = scmp.eq.s32.totalorder %s8, 0
    %p49 = por %p47, %p48
    %p50 = scmp.ne.s32.totalorder %s42, %s44
    %p51 = scmp.eq.s32.totalorder %s13, 1
    %p52 = por %p50, %p51
    %p53 = scmp.ne.s32.totalorder %s44, %s45
    %p54 = scmp.eq.s32.totalorder %s13, 0
    %p55 = por %p53, %p54
    %p56 = scmp.ne.s32.totalorder %s44, %s45
    %p57 = scmp.eq.s32.totalorder %s14, 1
    %p58 = por %p56, %p57
    %p60 = scmp.ne.s32.totalorder %s45, %s59
    %p61 = scmp.eq.s32.totalorder %s14, 0
    %p62 = por %p60, %p61
    %s63 = ssub.s32 %s8, %s15
    %p64 = scmp.eq.s32.totalorder %s63, 0
    %s66 = sadd.s32 %s65, 1
    %s67 = scalar_select %p64, %s65, %s66
    %p70 = pneg %p64
    %p71 = scmp.eq.s32.totalorder %s8, 1
    %p72 = por %p70, %p71
    %p73 = scmp.ne.s32.totalorder %s65, %s68
    %p74 = scmp.eq.s32.totalorder %s8, 0
    %p75 = por %p73, %p74
    %p76 = scmp.ne.s32.totalorder %s65, %s68
    %p77 = scmp.eq.s32.totalorder %s13, 1
    %p78 = por %p76, %p77
    %p79 = scmp.ne.s32.totalorder %s68, %s69
    %p80 = scmp.eq.s32.totalorder %s13, 0
    %p81 = por %p79, %p80
    %p82 = scmp.ne.s32.totalorder %s68, %s69
    %p83 = scmp.eq.s32.totalorder %s14, 1
    %p84 = por %p82, %p83
    %p86 = scmp.ne.s32.totalorder %s69, %s85
    %p87 = scmp.eq.s32.totalorder %s14, 0
    %p88 = por %p86, %p87
    %p89 = scmp.le.s32.totalorder 1, %s8
    %p90 = scmp.lt.s32.totalorder %s8, 3
    %p91 = pnand %p89, %p90
    %p92 = pneg %p91
    // Predicated region
    $region9: #{downsample_a.1} parent=5 // pred_check
      _
    $region10: #{downsample_a.1} parent=5 // pred_check_branch
      %94 = sbr.rel (%p91) target = $region12
    $region11: #{downsample_a.1} parent=5 // pred_region
      %s95 = ssub.s32 %s8, 1
      // Predicated region
      $region13: #{downsample_a.1} parent=11 // pred_check
        %p96 = pneg %p55
      $region14: #{downsample_a.1} parent=11 // pred_check_branch
        %98 = sbr.rel (%p96) target = $region16
      $region15: #{downsample_a.1} parent=11 // pred_region
        _
      $region16: #{downsample_a.1} parent=11 // pred_fallthru
        _
    $region12: #{downsample_a.1} parent=5 // pred_fallthru
      _
    %p99 = scmp.lt.s32.totalorder %s8, 2
    // Predicated region
    $region17: #{downsample_a.1} parent=5 // pred_check
      %p100 = pneg %p99
    $region18: #{downsample_a.1} parent=5 // pred_check_branch
      %102 = sbr.rel (%p100) target = $region20
    $region19: #{downsample_a.1} parent=5 // pred_region
      // Predicated region
      $region21: #{downsample_a.1} parent=19 // pred_check
        %p103 = pneg %p28
      $region22: #{downsample_a.1} parent=19 // pred_check_branch
        %105 = sbr.rel (%p103) target = $region24
      $region23: #{downsample_a.1} parent=19 // pred_region
        %p106 = scmp.lt.s32.totalorder %s8, 1
        %s107 = scalar_select %p106, %s8, 1
        %s108 = smul.addr %s107, 4
        %s109 = smul.addr %s108, 2
        %s110 = scalar_lea.vmem %s0, %s109
      $region24: #{downsample_a.1} parent=19 // pred_fallthru
        _
    $region20: #{downsample_a.1} parent=5 // pred_fallthru
      _
    %p111 = scmp.le.s32.totalorder 1, %s8
    %p112 = scmp.lt.s32.totalorder %s8, 3
    %p113 = pnand %p111, %p112
    %p114 = pneg %p113
    // Predicated region
    $region25: #{downsample_a.1} parent=5 // pred_check
      _
    $region26: #{downsample_a.1} parent=5 // pred_check_branch
      %116 = sbr.rel (%p113) target = $region28
    $region27: #{downsample_a.1} parent=5 // pred_region
      %s117 = ssub.s32 %s8, 1
      %p118 = scmp.lt.s32.totalorder %s13, 1
      %s119 = scalar_select %p118, %s13, 1
      %s120 = smul.addr %s119, 4
      %s121 = smul.addr %s120, 2
      %s122 = scalar_lea.vmem %s0, %s121
      %p123 = pneg %p34
      %p124 = pneg %p31
      %p125 = pneg %p55
      %p126 = pneg %p52
      %p127 = pneg %p81
      %p128 = pneg %p78
      %p129 = scmp.lt.s32.totalorder %s13, 1
      %s130 = scalar_select %p129, %s13, 1
      %s131 = smul.addr %s130, 4
      %s132 = scalar_lea.vmem %s2, %s131
      %p133 = scmp.lt.s32.totalorder %s13, 1
      %s134 = scalar_select %p133, %s13, 1
      %s135 = smul.addr %s134, 4
      %s136 = smul.addr %s135, 2
      %s137 = scalar_lea.vmem %s0, %s136
      %p138 = scmp.lt.s32.totalorder %s13, 1
      %s139 = scalar_select %p138, %s13, 1
      %s140 = smul.addr %s139, 4
      %s141 = scalar_lea.vmem %s2, %s140
      %v142 = vld [vmem:[%s137] sm:$0xff]
      %v143 = vld [vmem:[%s1] sm:$0xff]
      %v144 = vld [vmem:[%s1 + $0x8] sm:$0xff]
      %v145 = vld [vmem:[%s1 + $0x10] sm:$0xff]
      %v146 = vld [vmem:[%s1 + $0x18] sm:$0xff]
      %v147 = vld [vmem:[%s1 + $0x20] sm:$0xff]
      %v148 = vld [vmem:[%s1 + $0x28] sm:$0xff]
      %v149 = vld [vmem:[%s1 + $0x30] sm:$0xff]
      %v150 = vld [vmem:[%s1 + $0x38] sm:$0xff]
      %v151 = vld [vmem:[%s1 + $0x40] sm:$0xff]
      %v152 = vld [vmem:[%s1 + $0x48] sm:$0xff]
      %v153 = vld [vmem:[%s1 + $0x50] sm:$0xff]
      %v154 = vld [vmem:[%s1 + $0x58] sm:$0xff]
      %v155 = vld [vmem:[%s1 + $0x60] sm:$0xff]
      %v156 = vld [vmem:[%s1 + $0x68] sm:$0xff]
      %v157 = vld [vmem:[%s1 + $0x70] sm:$0xff]
      %v158 = vld [vmem:[%s1 + $0x78] sm:$0xff]
      %v159 = vld [vmem:[%s1 + $0x80] sm:$0xff]
      %v160 = vld [vmem:[%s1 + $0x88] sm:$0xff]
      %v161 = vld [vmem:[%s1 + $0x90] sm:$0xff]
      %v162 = vld [vmem:[%s1 + $0x98] sm:$0xff]
      %v163 = vld [vmem:[%s1 + $0xa0] sm:$0xff]
      %v164 = vld [vmem:[%s1 + $0xa8] sm:$0xff]
      %v165 = vld [vmem:[%s1 + $0xb0] sm:$0xff]
      %v166 = vld [vmem:[%s1 + $0xb8] sm:$0xff]
      %v167 = vld [vmem:[%s1 + $0xc0] sm:$0xff]
      %v168 = vld [vmem:[%s1 + $0xc8] sm:$0xff]
      %v169 = vld [vmem:[%s1 + $0xd0] sm:$0xff]
      %v170 = vld [vmem:[%s1 + $0xd8] sm:$0xff]
      %v171 = vld [vmem:[%s1 + $0xe0] sm:$0xff]
      %v172 = vld [vmem:[%s1 + $0xe8] sm:$0xff]
      %v173 = vld [vmem:[%s1 + $0xf0] sm:$0xff]
      %v174 = vld [vmem:[%s1 + $0xf8] sm:$0xff]
      %v175 = vld [vmem:[%s1 + $0x100] sm:$0xff]
      %v176 = vld [vmem:[%s1 + $0x108] sm:$0xff]
      %v177 = vld [vmem:[%s1 + $0x110] sm:$0xff]
      %v178 = vld [vmem:[%s1 + $0x118] sm:$0xff]
      %v179 = vld [vmem:[%s1 + $0x120] sm:$0xff]
      %v180 = vld [vmem:[%s1 + $0x128] sm:$0xff]
      %v181 = vld [vmem:[%s1 + $0x130] sm:$0xff]
      %v182 = vld [vmem:[%s1 + $0x138] sm:$0xff]
      %v183 = vld [vmem:[%s1 + $0x140] sm:$0xff]
      %v184 = vld [vmem:[%s1 + $0x148] sm:$0xff]
      %v185 = vld [vmem:[%s1 + $0x150] sm:$0xff]
      %v186 = vld [vmem:[%s1 + $0x158] sm:$0xff]
      %v187 = vld [vmem:[%s1 + $0x160] sm:$0xff]
      %v188 = vld [vmem:[%s1 + $0x168] sm:$0xff]
      %v189 = vld [vmem:[%s1 + $0x170] sm:$0xff]
      %v190 = vld [vmem:[%s1 + $0x178] sm:$0xff]
      %v191 = vld [vmem:[%s1 + $0x180] sm:$0xff]
      %v192 = vld [vmem:[%s1 + $0x188] sm:$0xff]
      %v193 = vld [vmem:[%s1 + $0x190] sm:$0xff]
      %v194 = vld [vmem:[%s1 + $0x198] sm:$0xff]
      %v195 = vld [vmem:[%s1 + $0x1a0] sm:$0xff]
      %v196 = vld [vmem:[%s1 + $0x1a8] sm:$0xff]
      %v197 = vld [vmem:[%s1 + $0x1b0] sm:$0xff]
      %v198 = vld [vmem:[%s1 + $0x1b8] sm:$0xff]
      %v199 = vld [vmem:[%s1 + $0x1c0] sm:$0xff]
      %v200 = vld [vmem:[%s1 + $0x1c8] sm:$0xff]
      %v201 = vld [vmem:[%s1 + $0x1d0] sm:$0xff]
      %v202 = vld [vmem:[%s1 + $0x1d8] sm:$0xff]
      %v203 = vld [vmem:[%s1 + $0x1e0] sm:$0xff]
      %v204 = vld [vmem:[%s1 + $0x1e8] sm:$0xff]
      %v205 = vld [vmem:[%s1 + $0x1f0] sm:$0xff]
      %v206 = vld [vmem:[%s1 + $0x1f8] sm:$0xff]
      %208 = vst [vmem:[#allocation1] ss:$4 sm:$0xff] %v142
      %v209 = vld.sshfl [vmem:[#allocation1] sm:$0xff pattern:$0x73625140]
      %v210 = vld.sshfl [vmem:[#allocation1 + $0x8] sm:$0xff pattern:$0x73625140]
      %v211 = vld.sshfl [vmem:[#allocation1 + $0x10] sm:$0xff pattern:$0x73625140]
      %v212 = vld.sshfl [vmem:[#allocation1 + $0x18] sm:$0xff pattern:$0x73625140]
      %217 = vmatpush.msra.mxu0 %v158
      %218 = vmatpush.msra.mxu0 %v157
      %219 = vmatpush.msra.mxu0 %v156
      %220 = vmatpush.msra.mxu0 %v155
      %221 = vmatpush.msra.mxu0 %v154
      %222 = vmatpush.msra.mxu0 %v153
      %223 = vmatpush.msra.mxu0 %v152
      %224 = vmatpush.msra.mxu0 %v151
      %225 = vmatpush.msra.mxu0 %v150
      %226 = vmatpush.msra.mxu0 %v149
      %227 = vmatpush.msra.mxu0 %v148
      %228 = vmatpush.msra.mxu0 %v147
      %229 = vmatpush.msra.mxu0 %v146
      %230 = vmatpush.msra.mxu0 %v145
      %231 = vmatpush.msra.mxu0 %v144
      %232 = vmatpush.msra.mxu0 %v143
      %233 = vmatmul.f32.gmra.mxu0 %v209
      %v234 = vpop.f32.mrf.mxu0
      %v235 = vadd.f32 0.0, %v234
      %236 = vdwg.mxu0
      %237 = vmatpush.msra.mxu0 %v174
      %238 = vmatpush.msra.mxu0 %v173
      %239 = vmatpush.msra.mxu0 %v172
      %240 = vmatpush.msra.mxu0 %v171
      %241 = vmatpush.msra.mxu0 %v170
      %242 = vmatpush.msra.mxu0 %v169
      %243 = vmatpush.msra.mxu0 %v168
      %244 = vmatpush.msra.mxu0 %v167
      %245 = vmatpush.msra.mxu0 %v166
      %246 = vmatpush.msra.mxu0 %v165
      %247 = vmatpush.msra.mxu0 %v164
      %248 = vmatpush.msra.mxu0 %v163
      %249 = vmatpush.msra.mxu0 %v162
      %250 = vmatpush.msra.mxu0 %v161
      %251 = vmatpush.msra.mxu0 %v160
      %252 = vmatpush.msra.mxu0 %v159
      %253 = vmatmul.f32.gmra.mxu0 %v210
      %v254 = vpop.f32.mrf.mxu0
      %v255 = vadd.f32 %v235, %v254
      %256 = vdwg.mxu0
      %257 = vmatpush.msra.mxu0 %v190
      %258 = vmatpush.msra.mxu0 %v189
      %259 = vmatpush.msra.mxu0 %v188
      %260 = vmatpush.msra.mxu0 %v187
      %261 = vmatpush.msra.mxu0 %v186
      %262 = vmatpush.msra.mxu0 %v185
      %263 = vmatpush.msra.mxu0 %v184
      %264 = vmatpush.msra.mxu0 %v183
      %265 = vmatpush.msra.mxu0 %v182
      %266 = vmatpush.msra.mxu0 %v181
      %267 = vmatpush.msra.mxu0 %v180
      %268 = vmatpush.msra.mxu0 %v179
      %269 = vmatpush.msra.mxu0 %v178
      %270 = vmatpush.msra.mxu0 %v177
      %271 = vmatpush.msra.mxu0 %v176
      %272 = vmatpush.msra.mxu0 %v175
      %273 = vmatmul.f32.gmra.mxu0 %v211
      %v274 = vpop.f32.mrf.mxu0
      %v275 = vadd.f32 %v255, %v274
      %276 = vdwg.mxu0
      %277 = vmatpush.msra.mxu0 %v206
      %278 = vmatpush.msra.mxu0 %v205
      %279 = vmatpush.msra.mxu0 %v204
      %280 = vmatpush.msra.mxu0 %v203
      %281 = vmatpush.msra.mxu0 %v202
      %282 = vmatpush.msra.mxu0 %v201
      %283 = vmatpush.msra.mxu0 %v200
      %284 = vmatpush.msra.mxu0 %v199
      %285 = vmatpush.msra.mxu0 %v198
      %286 = vmatpush.msra.mxu0 %v197
      %287 = vmatpush.msra.mxu0 %v196
      %288 = vmatpush.msra.mxu0 %v195
      %289 = vmatpush.msra.mxu0 %v194
      %290 = vmatpush.msra.mxu0 %v193
      %291 = vmatpush.msra.mxu0 %v192
      %292 = vmatpush.msra.mxu0 %v191
      %293 = vmatmul.f32.gmra.mxu0 %v212
      %v294 = vpop.f32.mrf.mxu0
      %v295 = vadd.f32 %v275, %v294
      %296 = vdwg.mxu0
      %297 = vst [vmem:[%s141] sm:$0x3] %v295
      %298 = vst [vmem:[%s141 + $0x2] sm:$0x3] 0.0
      %p299 = scmp.lt.s32.totalorder %s13, 1
      %s300 = scalar_select %p299, %s13, 1
      %s301 = smul.addr %s300, 4
      %s302 = scalar_lea.vmem %s2, %s301
      // Predicated region
      $region29: #{downsample_a.1} parent=27 // pred_check
        %p303 = pneg %p78
      $region30: #{downsample_a.1} parent=27 // pred_check_branch
        %305 = sbr.rel (%p303) target = $region32
      $region31: #{downsample_a.1} parent=27 // pred_region
        _
      $region32: #{downsample_a.1} parent=27 // pred_fallthru
        _
    $region28: #{downsample_a.1} parent=5 // pred_fallthru
      _
    %p306 = scmp.le.s32.totalorder 2, %s8
    // Predicated region
    $region33: #{downsample_a.1} parent=5 // pred_check
      %p307 = pneg %p306
    $region34: #{downsample_a.1} parent=5 // pred_check_branch
      %309 = sbr.rel (%p307) target = $region36
    $region35: #{downsample_a.1} parent=5 // pred_region
      %s310 = ssub.s32 %s8, 2
      // Predicated region
      $region37: #{downsample_a.1} parent=35 // pred_check
        %p311 = pneg %p84
      $region38: #{downsample_a.1} parent=35 // pred_check_branch
        %313 = sbr.rel (%p311) target = $region40
      $region39: #{downsample_a.1} parent=35 // pred_region
        %p314 = scmp.lt.s32.totalorder %s14, 1
        %s315 = scalar_select %p314, %s14, 1
        %s316 = smul.addr %s315, 4
        %s317 = scalar_lea.vmem %s2, %s316
      $region40: #{downsample_a.1} parent=35 // pred_fallthru
        _
    $region36: #{downsample_a.1} parent=5 // pred_fallthru
      _
  $region6: #{downsample_a.1} parent=0 // loop_footer
    %s12 = sadd.s32 1, %s8
  $region7: #{downsample_a.1} parent=0 // loop_footer_branch
    %7 = sbr.rel target = $region3
  $region8: #{downsample_a.1} parent=0 // loop_exit
    _

</llo_original>
